<compile_context>
chip_gen: v7x
topology: tpu7x:2x2x1
jax: 0.10.0
libtpu: 0.0.40
codegen_flags: <defaults>
</compile_context>

<pallas_src>
import math

import jax
import jax.numpy as jnp
from jax.experimental import pallas as pl
from jax.experimental.pallas import tpu as pltpu


def _fused_kernel(lidar_ref, image_ref, w_ref, out_ref):
    Bt = lidar_ref.shape[0]          # batches handled by this grid step
    D = lidar_ref.shape[1]           # feature dim
    N = lidar_ref.shape[2]           # sequence length
    M = Bt * N

    # (Bt, D, N) -> (Bt, N, D): pure relayout (XLU), exact in f32.  The lidar
    # half doubles as the bit-exact passthrough for the output concat.
    lidar_t = jnp.swapaxes(lidar_ref[...], 1, 2)                     # (Bt, N, D) f32
    image_t = jnp.swapaxes(image_ref[...], 1, 2)                     # (Bt, N, D) f32

    lidar_flat = lidar_t.reshape(M, D).astype(jnp.bfloat16)          # (M, D)
    image_flat = image_t.reshape(M, D).astype(jnp.bfloat16)          # (M, D)

    w = w_ref[...]                   # (D, 8D) bf16 packed weight slab

    # One MXU push for every input projection of both layers:
    #   LHS = [lidar rows ; image rows]  (2M, D),  RHS = full 8D-wide slab
    # (8D = 256 lanes fills the v6e/v7x MXU; unused column/row products are
    #  cheaper than extra per-matmul push/pop latency at these sizes).
    xs = jnp.concatenate([lidar_flat, image_flat], axis=0)           # (2M, D)
    proj = jnp.dot(xs, w, preferred_element_type=jnp.float32)        # (2M, 8D) f32

    q1 = proj[:M, 0 * D:1 * D]       # 1/sqrt(D) pre-folded into Wq1
    k1 = proj[M:, 1 * D:2 * D]
    v1 = proj[M:, 2 * D:3 * D]
    k2 = proj[M:, 3 * D:4 * D]
    v2 = proj[M:, 4 * D:5 * D]

    def attend(q, k, v):
        """Batched single-head attention core; softmax kept entirely in f32."""
        qb = q.reshape(Bt, N, D).astype(jnp.bfloat16)
        kb = k.reshape(Bt, N, D).astype(jnp.bfloat16)
        vb = v.reshape(Bt, N, D).astype(jnp.bfloat16)
        s = jnp.einsum('bqd,bkd->bqk', qb, kb,
                       preferred_element_type=jnp.float32)           # (Bt, N, N)
        m = jnp.max(s, axis=-1, keepdims=True)
        p = jnp.exp(s - m)
        denom = jnp.sum(p, axis=-1, keepdims=True)
        p = p * pl.reciprocal(denom, approx=True)
        o = jnp.einsum('bqk,bkd->bqd', p.astype(jnp.bfloat16), vb,
                       preferred_element_type=jnp.float32)           # (Bt, N, D)
        return o.reshape(M, D)

    # Layer 1 (Wo1 is folded into layer 2's Wq2 host-side, since x1 is consumed
    # only as layer 2's query input and never appears in the output).
    o1 = attend(q1, k1, v1)                                          # (M, D) f32

    # Layer 2: q2 = ((o1 @ Wo1) @ Wq2) / sqrt(D) == o1 @ Wq2_fold.
    q2 = jnp.dot(o1.astype(jnp.bfloat16), w[:, 5 * D:6 * D],
                 preferred_element_type=jnp.float32)                 # (M, D)
    o2 = attend(q2, k2, v2)
    x2 = jnp.dot(o2.astype(jnp.bfloat16), w[:, 6 * D:7 * D],
                 preferred_element_type=jnp.float32)                 # (M, D)

    # Fused torch.concat((x, lidar_t), dim=1): two direct slice stores,
    # no concatenated (2N, D) VMEM temporary.
    out_ref[:, :N, :] = x2.reshape(Bt, N, D).astype(out_ref.dtype)
    out_ref[:, N:, :] = lidar_t.astype(out_ref.dtype)


def _pack_weights(params1, params2, d):
    """Pack both layers' weights into one (D, 8D) bf16 slab (single DMA).

    Column layout: [Wq1/sqrt(D) | Wk1 | Wv1 | Wk2 | Wv2 | Wo1@Wq2/sqrt(D) | Wo2 | 0]
    (the zero pad keeps the slab 8D = 256 lanes wide -> clean lane tiling).
    """
    wq1, wk1, wv1, wo1 = params1
    wq2, wk2, wv2, wo2 = params2
    scale = 1.0 / math.sqrt(d)
    wq2_fold = wo1 @ (wq2 * scale)           # x1 only feeds layer-2's Q proj
    zeros = jnp.zeros_like(wq1)
    slab = jnp.concatenate(
        [wq1 * scale, wk1, wv1, wk2, wv2, wq2_fold, wo2, zeros], axis=1)
    return slab.astype(jnp.bfloat16)


def _pick_block_batch(b, max_bt=8):
    """Largest divisor of b that is <= max_bt (batches per grid step)."""
    bt = min(b, max_bt)
    while b % bt:
        bt -= 1
    return bt


def cross_feature_highlight(lidar, image, params1, params2):
    """lidar, image: (B, D, N) float32 (torch NCL layout). Output (B, 2N, D)."""
    B, D, N = lidar.shape
    bt = _pick_block_batch(B)                 # amortize ~0.35us/grid-step overhead
    w = _pack_weights(params1, params2, D)    # (D, 8D) bf16
    return pl.pallas_call(
        _fused_kernel,
        out_shape=jax.ShapeDtypeStruct((B, 2 * N, D), lidar.dtype),
        grid_spec=pltpu.PrefetchScalarGridSpec(
            num_scalar_prefetch=0,
            grid=(B // bt,),
            in_specs=[
                pl.BlockSpec((bt, D, N), lambda b: (b, 0, 0)),     # lidar (NCL)
                pl.BlockSpec((bt, D, N), lambda b: (b, 0, 0)),     # image (NCL)
                pl.BlockSpec((D, 8 * D), lambda b: (0, 0)),        # packed weights
            ],
            out_specs=pl.BlockSpec((bt, 2 * N, D), lambda b: (b, 0, 0)),
        ),
        compiler_params=pltpu.CompilerParams(
            dimension_semantics=("parallel",)),
    )(lidar, image, w)


def init_cross_attention_params(key, d):
    """Deterministic Linear-style init for one crossAttention layer."""
    ks = jax.random.split(key, 4)
    bound = 1.0 / math.sqrt(d)
    return tuple(
        jax.random.uniform(k, (d, d), jnp.float32, -bound, bound) for k in ks
    )


def _reference(lidar, image, params1, params2):
    """Pure-JAX f32 reference (same canonical crossAttention interpretation)."""
    lt = jnp.swapaxes(lidar, 1, 2)
    it = jnp.swapaxes(image, 1, 2)

    def att(xq, xkv, params):
        wq, wk, wv, wo = params
        d = xq.shape[-1]
        q = xq @ wq
        k = xkv @ wk
        v = xkv @ wv
        s = jnp.einsum('bnd,bmd->bnm', q, k) * (1.0 / math.sqrt(d))
        p = jax.nn.softmax(s, axis=-1)
        return jnp.einsum('bnm,bmd->bnd', p, v) @ wo

    x = att(lt, it, params1)
    x = att(x, it, params2)
    return jnp.concatenate([x, lt], axis=1)


if __name__ == "__main__":
    key = jax.random.PRNGKey(0)
    k_lidar, k_image, k_p1, k_p2 = jax.random.split(key, 4)

    B, D, N = 2, 32, 8   # batch, feature/channel dim, sequence length
    lidar = jax.random.normal(k_lidar, (B, D, N), jnp.float32)
    image = jax.random.normal(k_image, (B, D, N), jnp.float32)

    params1 = init_cross_attention_params(k_p1, D)
    params2 = init_cross_attention_params(k_p2, D)

    out = cross_feature_highlight(lidar, image, params1, params2)
    jax.block_until_ready(out)

    assert out.shape == (B, 2 * N, D), out.shape
    assert bool(jnp.all(jnp.isfinite(out)))

    # Loose tolerance: kernel runs matmuls in bf16 (f32 accumulation) and uses
    # an approximate reciprocal in the softmax; reference is full f32.
    ref = _reference(lidar, image, params1, params2)
    assert bool(jnp.allclose(out, ref, rtol=1e-1, atol=5e-2)), (
        float(jnp.max(jnp.abs(out - ref))))

    print("KERNEL_OK")
</pallas_src>

<mosaic_0001>
module attributes {stable_mosaic.version = 11 : i64} {
  func.func @_fused_kernel(%arg0: i32, %arg1: memref<2x32x8xf32, #tpu.memory_space<vmem>>, %arg2: memref<2x32x8xf32, #tpu.memory_space<vmem>>, %arg3: memref<32x256xbf16, #tpu.memory_space<vmem>>, %arg4: memref<2x16x32xf32, #tpu.memory_space<vmem>>) attributes {dimension_semantics = [#tpu.dimension_semantics<parallel>], iteration_bounds = array<i64: 1>, scalar_prefetch = 0 : i64, scratch_operands = 0 : i64, tpu.core_type = #tpu.core_type<tc>, window_params = [{transform_indices = @transform_0, window_bounds = array<i64: 2, 32, 8>}, {transform_indices = @transform_1, window_bounds = array<i64: 2, 32, 8>}, {pipeline_mode = #tpu.pipeline_mode<synchronous>, transform_indices = @transform_2, window_bounds = array<i64: 32, 256>}, {transform_indices = @transform_3, window_bounds = array<i64: 2, 16, 32>}]} {
    %c0 = arith.constant 0 : index
    %c0_0 = arith.constant 0 : index
    %c0_1 = arith.constant 0 : index
    %0 = vector.load %arg1[%c0, %c0_0, %c0_1] : memref<2x32x8xf32, #tpu.memory_space<vmem>>, vector<2x32x8xf32>
    %1 = tpu.transpose %0, [0, 2, 1] : vector<2x32x8xf32> -> vector<2x8x32xf32>
    %c0_2 = arith.constant 0 : index
    %c0_3 = arith.constant 0 : index
    %c0_4 = arith.constant 0 : index
    %2 = vector.load %arg2[%c0_2, %c0_3, %c0_4] : memref<2x32x8xf32, #tpu.memory_space<vmem>>, vector<2x32x8xf32>
    %3 = tpu.transpose %2, [0, 2, 1] : vector<2x32x8xf32> -> vector<2x8x32xf32>
    %4 = vector.shape_cast %1 : vector<2x8x32xf32> to vector<16x32xf32>
    %5 = arith.truncf %4 : vector<16x32xf32> to vector<16x32xbf16>
    %6 = vector.shape_cast %3 : vector<2x8x32xf32> to vector<16x32xf32>
    %7 = arith.truncf %6 : vector<16x32xf32> to vector<16x32xbf16>
    %c0_5 = arith.constant 0 : index
    %c0_6 = arith.constant 0 : index
    %8 = vector.load %arg3[%c0_5, %c0_6] : memref<32x256xbf16, #tpu.memory_space<vmem>>, vector<32x256xbf16>
    %9 = tpu.concatenate %5, %7 in 0 : vector<16x32xbf16>, vector<16x32xbf16> -> vector<32x32xbf16>
    %cst = arith.constant dense<0.000000e+00> : vector<32x256xf32>
    %10 = tpu.matmul %9, %8, %cst {dimension_numbers = #tpu.dot_dimension_numbers<[1], [0], [0], [1], [0, 0, 1, 1], [], []>} : vector<32x32xbf16>, vector<32x256xbf16>, vector<32x256xf32> -> vector<32x256xf32>
    %11 = vector.extract_strided_slice %10 {offsets = [0, 0], sizes = [16, 32], strides = [1, 1]} : vector<32x256xf32> to vector<16x32xf32>
    %12 = vector.extract_strided_slice %10 {offsets = [16, 32], sizes = [16, 32], strides = [1, 1]} : vector<32x256xf32> to vector<16x32xf32>
    %13 = vector.extract_strided_slice %10 {offsets = [16, 64], sizes = [16, 32], strides = [1, 1]} : vector<32x256xf32> to vector<16x32xf32>
    %14 = vector.extract_strided_slice %10 {offsets = [16, 96], sizes = [16, 32], strides = [1, 1]} : vector<32x256xf32> to vector<16x32xf32>
    %15 = vector.extract_strided_slice %10 {offsets = [16, 128], sizes = [16, 32], strides = [1, 1]} : vector<32x256xf32> to vector<16x32xf32>
    %16 = vector.shape_cast %11 : vector<16x32xf32> to vector<2x8x32xf32>
    %17 = arith.truncf %16 : vector<2x8x32xf32> to vector<2x8x32xbf16>
    %18 = vector.shape_cast %12 : vector<16x32xf32> to vector<2x8x32xf32>
    %19 = arith.truncf %18 : vector<2x8x32xf32> to vector<2x8x32xbf16>
    %20 = vector.shape_cast %13 : vector<16x32xf32> to vector<2x8x32xf32>
    %21 = arith.truncf %20 : vector<2x8x32xf32> to vector<2x8x32xbf16>
    "tpu.trace_start"() <{level = 10 : i32, message = "bqd,bkd->bqk"}> : () -> ()
    %cst_7 = arith.constant dense<0.000000e+00> : vector<2x8x8xf32>
    %22 = tpu.matmul %17, %19, %cst_7 {dimension_numbers = #tpu.dot_dimension_numbers<[2], [2], [1], [1], [0, 0, 0, 1, 1, 1], [0], [0]>} : vector<2x8x32xbf16>, vector<2x8x32xbf16>, vector<2x8x8xf32> -> vector<2x8x8xf32>
    "tpu.trace_stop"() : () -> ()
    %cst_8 = arith.constant dense<0xFF800000> : vector<2x8xf32>
    %23 = vector.multi_reduction <maximumf>, %22, %cst_8 [2] : vector<2x8x8xf32> to vector<2x8xf32>
    %24 = vector.shape_cast %23 : vector<2x8xf32> to vector<2x8x1xf32>
    %25 = vector.broadcast %24 : vector<2x8x1xf32> to vector<2x8x8xf32>
    %26 = arith.subf %22, %25 : vector<2x8x8xf32>
    %27 = math.exp %26 : vector<2x8x8xf32>
    %cst_9 = arith.constant dense<0.000000e+00> : vector<2x8xf32>
    %28 = vector.multi_reduction <add>, %27, %cst_9 [2] : vector<2x8x8xf32> to vector<2x8xf32>
    %29 = vector.shape_cast %28 : vector<2x8xf32> to vector<2x8x1xf32>
    %30 = tpu.reciprocal %29 {approx = true} : vector<2x8x1xf32> -> vector<2x8x1xf32>
    %31 = vector.broadcast %30 : vector<2x8x1xf32> to vector<2x8x8xf32>
    %32 = arith.mulf %27, %31 : vector<2x8x8xf32>
    %33 = arith.truncf %32 : vector<2x8x8xf32> to vector<2x8x8xbf16>
    "tpu.trace_start"() <{level = 10 : i32, message = "bqk,bkd->bqd"}> : () -> ()
    %cst_10 = arith.constant dense<0.000000e+00> : vector<2x8x32xf32>
    %34 = tpu.matmul %33, %21, %cst_10 {dimension_numbers = #tpu.dot_dimension_numbers<[2], [1], [1], [2], [0, 0, 0, 1, 1, 2], [0], [0]>} : vector<2x8x8xbf16>, vector<2x8x32xbf16>, vector<2x8x32xf32> -> vector<2x8x32xf32>
    "tpu.trace_stop"() : () -> ()
    %35 = vector.shape_cast %34 : vector<2x8x32xf32> to vector<16x32xf32>
    %36 = arith.truncf %35 : vector<16x32xf32> to vector<16x32xbf16>
    %37 = vector.extract_strided_slice %8 {offsets = [0, 160], sizes = [32, 32], strides = [1, 1]} : vector<32x256xbf16> to vector<32x32xbf16>
    %cst_11 = arith.constant dense<0.000000e+00> : vector<16x32xf32>
    %38 = tpu.matmul %36, %37, %cst_11 {dimension_numbers = #tpu.dot_dimension_numbers<[1], [0], [0], [1], [0, 0, 1, 1], [], []>} : vector<16x32xbf16>, vector<32x32xbf16>, vector<16x32xf32> -> vector<16x32xf32>
    %39 = vector.shape_cast %38 : vector<16x32xf32> to vector<2x8x32xf32>
    %40 = arith.truncf %39 : vector<2x8x32xf32> to vector<2x8x32xbf16>
    %41 = vector.shape_cast %14 : vector<16x32xf32> to vector<2x8x32xf32>
    %42 = arith.truncf %41 : vector<2x8x32xf32> to vector<2x8x32xbf16>
    %43 = vector.shape_cast %15 : vector<16x32xf32> to vector<2x8x32xf32>
    %44 = arith.truncf %43 : vector<2x8x32xf32> to vector<2x8x32xbf16>
    "tpu.trace_start"() <{level = 10 : i32, message = "bqd,bkd->bqk"}> : () -> ()
    %cst_12 = arith.constant dense<0.000000e+00> : vector<2x8x8xf32>
    %45 = tpu.matmul %40, %42, %cst_12 {dimension_numbers = #tpu.dot_dimension_numbers<[2], [2], [1], [1], [0, 0, 0, 1, 1, 1], [0], [0]>} : vector<2x8x32xbf16>, vector<2x8x32xbf16>, vector<2x8x8xf32> -> vector<2x8x8xf32>
    "tpu.trace_stop"() : () -> ()
    %cst_13 = arith.constant dense<0xFF800000> : vector<2x8xf32>
    %46 = vector.multi_reduction <maximumf>, %45, %cst_13 [2] : vector<2x8x8xf32> to vector<2x8xf32>
    %47 = vector.shape_cast %46 : vector<2x8xf32> to vector<2x8x1xf32>
    %48 = vector.broadcast %47 : vector<2x8x1xf32> to vector<2x8x8xf32>
    %49 = arith.subf %45, %48 : vector<2x8x8xf32>
    %50 = math.exp %49 : vector<2x8x8xf32>
    %cst_14 = arith.constant dense<0.000000e+00> : vector<2x8xf32>
    %51 = vector.multi_reduction <add>, %50, %cst_14 [2] : vector<2x8x8xf32> to vector<2x8xf32>
    %52 = vector.shape_cast %51 : vector<2x8xf32> to vector<2x8x1xf32>
    %53 = tpu.reciprocal %52 {approx = true} : vector<2x8x1xf32> -> vector<2x8x1xf32>
    %54 = vector.broadcast %53 : vector<2x8x1xf32> to vector<2x8x8xf32>
    %55 = arith.mulf %50, %54 : vector<2x8x8xf32>
    %56 = arith.truncf %55 : vector<2x8x8xf32> to vector<2x8x8xbf16>
    "tpu.trace_start"() <{level = 10 : i32, message = "bqk,bkd->bqd"}> : () -> ()
    %cst_15 = arith.constant dense<0.000000e+00> : vector<2x8x32xf32>
    %57 = tpu.matmul %56, %44, %cst_15 {dimension_numbers = #tpu.dot_dimension_numbers<[2], [1], [1], [2], [0, 0, 0, 1, 1, 2], [0], [0]>} : vector<2x8x8xbf16>, vector<2x8x32xbf16>, vector<2x8x32xf32> -> vector<2x8x32xf32>
    "tpu.trace_stop"() : () -> ()
    %58 = vector.shape_cast %57 : vector<2x8x32xf32> to vector<16x32xf32>
    %59 = arith.truncf %58 : vector<16x32xf32> to vector<16x32xbf16>
    %60 = vector.extract_strided_slice %8 {offsets = [0, 192], sizes = [32, 32], strides = [1, 1]} : vector<32x256xbf16> to vector<32x32xbf16>
    %cst_16 = arith.constant dense<0.000000e+00> : vector<16x32xf32>
    %61 = tpu.matmul %59, %60, %cst_16 {dimension_numbers = #tpu.dot_dimension_numbers<[1], [0], [0], [1], [0, 0, 1, 1], [], []>} : vector<16x32xbf16>, vector<32x32xbf16>, vector<16x32xf32> -> vector<16x32xf32>
    %62 = vector.shape_cast %61 : vector<16x32xf32> to vector<2x8x32xf32>
    %c0_17 = arith.constant 0 : index
    %c0_18 = arith.constant 0 : index
    %c0_19 = arith.constant 0 : index
    %63 = vector.load %arg4[%c0_17, %c0_18, %c0_19] : memref<2x16x32xf32, #tpu.memory_space<vmem>>, vector<2x8x32xf32>
    tpu.vector_store %arg4[%c0_17, %c0_18, %c0_19], %62 {strides = array<i32>} : memref<2x16x32xf32, #tpu.memory_space<vmem>>, vector<2x8x32xf32>,
    %c0_20 = arith.constant 0 : index
    %c8 = arith.constant 8 : index
    %c0_21 = arith.constant 0 : index
    %64 = vector.load %arg4[%c0_20, %c8, %c0_21] : memref<2x16x32xf32, #tpu.memory_space<vmem>>, vector<2x8x32xf32>
    tpu.vector_store %arg4[%c0_20, %c8, %c0_21], %1 {strides = array<i32>} : memref<2x16x32xf32, #tpu.memory_space<vmem>>, vector<2x8x32xf32>,
    return
  }
  func.func @transform_0(%arg0: i32) -> (i32, i32, i32) {
    %c0_i32 = arith.constant 0 : i32
    %c0_i32_0 = arith.constant 0 : i32
    %c0_i32_1 = arith.constant 0 : i32
    return %arg0, %c0_i32, %c0_i32_0 : i32, i32, i32
  }
  func.func @transform_1(%arg0: i32) -> (i32, i32, i32) {
    %c0_i32 = arith.constant 0 : i32
    %c0_i32_0 = arith.constant 0 : i32
    %c0_i32_1 = arith.constant 0 : i32
    return %arg0, %c0_i32, %c0_i32_0 : i32, i32, i32
  }
  func.func @transform_2(%arg0: i32) -> (i32, i32) {
    %c0_i32 = arith.constant 0 : i32
    %c0_i32_0 = arith.constant 0 : i32
    %c0_i32_1 = arith.constant 0 : i32
    return %c0_i32, %c0_i32_0 : i32, i32
  }
  func.func @transform_3(%arg0: i32) -> (i32, i32, i32) {
    %c0_i32 = arith.constant 0 : i32
    %c0_i32_0 = arith.constant 0 : i32
    %c0_i32_1 = arith.constant 0 : i32
    return %arg0, %c0_i32, %c0_i32_0 : i32, i32, i32
  }
}

</mosaic_0001>

<llo_original>
// kernel: tpu_custom_call.1
$region0: #{tpu_custom_call.1}
  #allocation0 [shape = 'u32[]', space=smem, size = 0x4, offset = 0x4, fixed_abs, tag = 'smem constant byte address 0x4 - core index']
  #allocation1 [shape = 'u32[144,128]{1,0:T(1,128)}', space=vmem, size = 0x12000, scoped, tag = 'internal scratch']
  %s0 = inlined_call_operand.vmem [shape: f32[2,32,8], index: 0, kind: input, shape index: {}]
  %s1 = inlined_call_operand.vmem [shape: f32[2,32,8], index: 1, kind: input, shape index: {}]
  %s2 = inlined_call_operand.vmem [shape: bf16[32,256], index: 2, kind: input, shape index: {}]
  %s3 = inlined_call_operand.hbm [shape: f32[2,16,32], index: 3, kind: output, shape index: {}]
  %s4 = sld [smem:[#allocation0]]
  $region22: #{tpu_custom_call.1} parent=0
    _
  %s6 = ssub.s32 1, %s4
  %s7 = scalar_select 0, %s6, %s4
  $region1: #{tpu_custom_call.1} parent=0
    #allocation2 [shape = 'u8[16384]{0}', space=vmem, size = 0x4000, scoped, tag = 'output window, operand 0, single buffered']
    #allocation3 [shape = 's32[1]{0}', space=sflag, size = 0x4, scoped, tag = 'scoped memory for tpu_custom_call.1']
    %8 = vsyncpa [#allocation3], 0
    // Predicated region
    $region2: #{tpu_custom_call.1} parent=1 // pred_check
      _
    $region3: #{tpu_custom_call.1} parent=1 // pred_check_branch
      %10 = sbr.rel (0) target = $region5
    $region4: #{tpu_custom_call.1} parent=1 // pred_region
      _
    $region5: #{tpu_custom_call.1} parent=1 // pred_fallthru
      _
    // Predicated region
    $region6: #{tpu_custom_call.1} parent=1 // pred_check
      _
    $region7: #{tpu_custom_call.1} parent=1 // pred_check_branch
      %12 = sbr.rel (0) target = $region9
    $region8: #{tpu_custom_call.1} parent=1 // pred_region
      _
    $region9: #{tpu_custom_call.1} parent=1 // pred_fallthru
      _
    // Predicated region
    $region10: #{tpu_custom_call.1} parent=1 // pred_check
      _
    $region11: #{tpu_custom_call.1} parent=1 // pred_check_branch
      %14 = sbr.rel (0) target = $region13
    $region12: #{tpu_custom_call.1} parent=1 // pred_region
      _
    $region13: #{tpu_custom_call.1} parent=1 // pred_fallthru
      _
    %v16 = vld [vmem:[%s0] sm:$0xff]
    %v17 = vld [vmem:[%s0 + $0x8] sm:$0xff]
    %v18 = vld [vmem:[%s0 + $0x10] sm:$0xff]
    %v19 = vld [vmem:[%s0 + $0x18] sm:$0xff]
    %v20 = vld [vmem:[%s0 + $0x20] sm:$0xff]
    %v21 = vld [vmem:[%s0 + $0x28] sm:$0xff]
    %v22 = vld [vmem:[%s0 + $0x30] sm:$0xff]
    %v23 = vld [vmem:[%s0 + $0x38] sm:$0xff]
    %24 = vxpose.xlu0.b32.start [1/16] %v16, 128
    %25 = vxpose.xlu0.b32.cont [2/16] %v17, 128
    %26 = vxpose.xlu0.b32.cont [3/16] %v18, 128
    %27 = vxpose.xlu0.b32.cont [4/16] %v19, 128
    %28 = vxpose.xlu0.b32.cont [5/16] 0.0, 128
    %29 = vxpose.xlu0.b32.cont [6/16] 0.0, 128
    %30 = vxpose.xlu0.b32.cont [7/16] 0.0, 128
    %31 = vxpose.xlu0.b32.cont [8/16] 0.0, 128
    %32 = vxpose.xlu0.b32.cont [9/16] 0.0, 128
    %33 = vxpose.xlu0.b32.cont [10/16] 0.0, 128
    %34 = vxpose.xlu0.b32.cont [11/16] 0.0, 128
    %35 = vxpose.xlu0.b32.cont [12/16] 0.0, 128
    %36 = vxpose.xlu0.b32.cont [13/16] 0.0, 128
    %37 = vxpose.xlu0.b32.cont [14/16] 0.0, 128
    %38 = vxpose.xlu0.b32.cont [15/16] 0.0, 128
    %39 = vxpose.xlu0.b32.end [16/16] 0.0, 128
    %v40 = vpop.trf.xlu0
    %v41 = vpop.trf.xlu0
    %v42 = vpop.trf.xlu0
    %v43 = vpop.trf.xlu0
    %v44 = vpop.trf.xlu0
    %v45 = vpop.trf.xlu0
    %v46 = vpop.trf.xlu0
    %v47 = vpop.trf.xlu0
    %v48 = vpop.trf.xlu0
    %v49 = vpop.trf.xlu0
    %v50 = vpop.trf.xlu0
    %v51 = vpop.trf.xlu0
    %v52 = vpop.trf.xlu0
    %v53 = vpop.trf.xlu0
    %v54 = vpop.trf.xlu0
    %v55 = vpop.trf.xlu0
    %56 = vxpose.xlu0.b32.start [1/16] %v20, 128
    %57 = vxpose.xlu0.b32.cont [2/16] %v21, 128
    %58 = vxpose.xlu0.b32.cont [3/16] %v22, 128
    %59 = vxpose.xlu0.b32.cont [4/16] %v23, 128
    %60 = vxpose.xlu0.b32.cont [5/16] 0.0, 128
    %61 = vxpose.xlu0.b32.cont [6/16] 0.0, 128
    %62 = vxpose.xlu0.b32.cont [7/16] 0.0, 128
    %63 = vxpose.xlu0.b32.cont [8/16] 0.0, 128
    %64 = vxpose.xlu0.b32.cont [9/16] 0.0, 128
    %65 = vxpose.xlu0.b32.cont [10/16] 0.0, 128
    %66 = vxpose.xlu0.b32.cont [11/16] 0.0, 128
    %67 = vxpose.xlu0.b32.cont [12/16] 0.0, 128
    %68 = vxpose.xlu0.b32.cont [13/16] 0.0, 128
    %69 = vxpose.xlu0.b32.cont [14/16] 0.0, 128
    %70 = vxpose.xlu0.b32.cont [15/16] 0.0, 128
    %71 = vxpose.xlu0.b32.end [16/16] 0.0, 128
    %v72 = vpop.trf.xlu0
    %v73 = vpop.trf.xlu0
    %v74 = vpop.trf.xlu0
    %v75 = vpop.trf.xlu0
    %v76 = vpop.trf.xlu0
    %v77 = vpop.trf.xlu0
    %v78 = vpop.trf.xlu0
    %v79 = vpop.trf.xlu0
    %v80 = vpop.trf.xlu0
    %v81 = vpop.trf.xlu0
    %v82 = vpop.trf.xlu0
    %v83 = vpop.trf.xlu0
    %v84 = vpop.trf.xlu0
    %v85 = vpop.trf.xlu0
    %v86 = vpop.trf.xlu0
    %v87 = vpop.trf.xlu0
    %v88 = vld [vmem:[%s1] sm:$0xff]
    %v89 = vld [vmem:[%s1 + $0x8] sm:$0xff]
    %v90 = vld [vmem:[%s1 + $0x10] sm:$0xff]
    %v91 = vld [vmem:[%s1 + $0x18] sm:$0xff]
    %v92 = vld [vmem:[%s1 + $0x20] sm:$0xff]
    %v93 = vld [vmem:[%s1 + $0x28] sm:$0xff]
    %v94 = vld [vmem:[%s1 + $0x30] sm:$0xff]
    %v95 = vld [vmem:[%s1 + $0x38] sm:$0xff]
    %96 = vxpose.xlu0.b32.start [1/16] %v88, 128
    %97 = vxpose.xlu0.b32.cont [2/16] %v89, 128
    %98 = vxpose.xlu0.b32.cont [3/16] %v90, 128
    %99 = vxpose.xlu0.b32.cont [4/16] %v91, 128
    %100 = vxpose.xlu0.b32.cont [5/16] 0.0, 128
    %101 = vxpose.xlu0.b32.cont [6/16] 0.0, 128
    %102 = vxpose.xlu0.b32.cont [7/16] 0.0, 128
    %103 = vxpose.xlu0.b32.cont [8/16] 0.0, 128
    %104 = vxpose.xlu0.b32.cont [9/16] 0.0, 128
    %105 = vxpose.xlu0.b32.cont [10/16] 0.0, 128
    %106 = vxpose.xlu0.b32.cont [11/16] 0.0, 128
    %107 = vxpose.xlu0.b32.cont [12/16] 0.0, 128
    %108 = vxpose.xlu0.b32.cont [13/16] 0.0, 128
    %109 = vxpose.xlu0.b32.cont [14/16] 0.0, 128
    %110 = vxpose.xlu0.b32.cont [15/16] 0.0, 128
    %111 = vxpose.xlu0.b32.end [16/16] 0.0, 128
    %v112 = vpop.trf.xlu0
    %v113 = vpop.trf.xlu0
    %v114 = vpop.trf.xlu0
    %v115 = vpop.trf.xlu0
    %v116 = vpop.trf.xlu0
    %v117 = vpop.trf.xlu0
    %v118 = vpop.trf.xlu0
    %v119 = vpop.trf.xlu0
    %v120 = vpop.trf.xlu0
    %v121 = vpop.trf.xlu0
    %v122 = vpop.trf.xlu0
    %v123 = vpop.trf.xlu0
    %v124 = vpop.trf.xlu0
    %v125 = vpop.trf.xlu0
    %v126 = vpop.trf.xlu0
    %v127 = vpop.trf.xlu0
    %128 = vxpose.xlu0.b32.start [1/16] %v92, 128
    %129 = vxpose.xlu0.b32.cont [2/16] %v93, 128
    %130 = vxpose.xlu0.b32.cont [3/16] %v94, 128
    %131 = vxpose.xlu0.b32.cont [4/16] %v95, 128
    %132 = vxpose.xlu0.b32.cont [5/16] 0.0, 128
    %133 = vxpose.xlu0.b32.cont [6/16] 0.0, 128
    %134 = vxpose.xlu0.b32.cont [7/16] 0.0, 128
    %135 = vxpose.xlu0.b32.cont [8/16] 0.0, 128
    %136 = vxpose.xlu0.b32.cont [9/16] 0.0, 128
    %137 = vxpose.xlu0.b32.cont [10/16] 0.0, 128
    %138 = vxpose.xlu0.b32.cont [11/16] 0.0, 128
    %139 = vxpose.xlu0.b32.cont [12/16] 0.0, 128
    %140 = vxpose.xlu0.b32.cont [13/16] 0.0, 128
    %141 = vxpose.xlu0.b32.cont [14/16] 0.0, 128
    %142 = vxpose.xlu0.b32.cont [15/16] 0.0, 128
    %143 = vxpose.xlu0.b32.end [16/16] 0.0, 128
    %v144 = vpop.trf.xlu0
    %v145 = vpop.trf.xlu0
    %v146 = vpop.trf.xlu0
    %v147 = vpop.trf.xlu0
    %v148 = vpop.trf.xlu0
    %v149 = vpop.trf.xlu0
    %v150 = vpop.trf.xlu0
    %v151 = vpop.trf.xlu0
    %v152 = vpop.trf.xlu0
    %v153 = vpop.trf.xlu0
    %v154 = vpop.trf.xlu0
    %v155 = vpop.trf.xlu0
    %v156 = vpop.trf.xlu0
    %v157 = vpop.trf.xlu0
    %v158 = vpop.trf.xlu0
    %v159 = vpop.trf.xlu0
    %v160 = vpack.c.bf16 %v72, %v40
    %v161 = vpack.c.bf16 %v144, %v112
    %v162 = vld [vmem:[%s2] sm:$0xff]
    %v163 = vld [vmem:[%s2 + $0x8] sm:$0xff]
    %v164 = vld [vmem:[%s2 + $0x10] sm:$0xff]
    %v165 = vld [vmem:[%s2 + $0x18] sm:$0xff]
    %v170 = vunpack.c.l.b16 %v162
    %v171 = vunpack.c.h.b16 %v162
    %v172 = vunpack.c.l.b16 %v163
    %v173 = vunpack.c.h.b16 %v163
    %v174 = vunpack.c.l.b16 %v164
    %v175 = vunpack.c.h.b16 %v164
    %v176 = vunpack.c.l.b16 %v165
    %v177 = vunpack.c.h.b16 %v165
    %v178 = vpack.c.b16 %v172, %v170
    %v179 = vpack.c.b16 %v173, %v171
    %v180 = vpack.c.b16 %v176, %v174
    %v181 = vpack.c.b16 %v177, %v175
    %vm186 = vcmask 261120
    %v188 = vsel %vm186, %v160, 0
    %v191 = vsel %vm186, %v161, 0
    %193 = vmatprep.subr.bf16.mxu0 %v179
    %194 = vmatpush1.bf16.msra.mxu0 %v178
    %195 = vmatprep.subr.bf16.mxu0 %v181
    %196 = vmatpush1.bf16.msra.mxu0 %v180
    %197 = vmatprep.subr.bf16.mxu0 0
    %198 = vmatpush1.bf16.msra.mxu0 0
    %199 = vmatprep.subr.bf16.mxu0 0
    %200 = vmatpush1.bf16.msra.mxu0 0
    %201 = vmatprep.subr.bf16.mxu0 0
    %202 = vmatpush1.bf16.msra.mxu0 0
    %203 = vmatprep.subr.bf16.mxu0 0
    %204 = vmatpush1.bf16.msra.mxu0 0
    %205 = vmatprep.subr.bf16.mxu0 0
    %206 = vmatpush1.bf16.msra.mxu0 0
    %207 = vmatprep.subr.bf16.mxu0 0
    %208 = vmatpush1.bf16.msra.mxu0 0
    %209 = vmatprep.subr.bf16.mxu0 0
    %210 = vmatpush1.bf16.msra.mxu0 0
    %211 = vmatprep.subr.bf16.mxu0 0
    %212 = vmatpush1.bf16.msra.mxu0 0
    %213 = vmatprep.subr.bf16.mxu0 0
    %214 = vmatpush1.bf16.msra.mxu0 0
    %215 = vmatprep.subr.bf16.mxu0 0
    %216 = vmatpush1.bf16.msra.mxu0 0
    %217 = vmatprep.subr.bf16.mxu0 0
    %218 = vmatpush1.bf16.msra.mxu0 0
    %219 = vmatprep.subr.bf16.mxu0 0
    %220 = vmatpush1.bf16.msra.mxu0 0
    %221 = vmatprep.subr.bf16.mxu0 0
    %222 = vmatpush1.bf16.msra.mxu0 0
    %223 = vmatprep.subr.bf16.mxu0 0
    %224 = vmatpush1.bf16.msra.mxu0 0
    %225 = vmatprep.mubr.bf16.mxu0 0
    %226 = vmatmul.mubr.bf16.gmra.mrb[0].mxu0 %v188
    %v227 = vpop.f32.mrb[0].mxu0
    %v228 = vadd.f32 0.0, %v227
    %v229 = vpop.f32.mrb[0].mxu0
    %v230 = vpop.f32.mrb[0].mxu0
    %v231 = vadd.f32 0.0, %v230
    %v232 = vpop.f32.mrb[0].mxu0
    %233 = vmatprep.mubr.bf16.mxu0 0
    %234 = vmatmul.mubr.bf16.gmra.mrb[0].mxu0 %v191
    %v235 = vpop.f32.mrb[0].mxu0
    %v236 = vadd.f32 0.0, %v235
    %v237 = vpop.f32.mrb[0].mxu0
    %v238 = vadd.f32 0.0, %v237
    %v239 = vpop.f32.mrb[0].mxu0
    %v240 = vadd.f32 0.0, %v239
    %v241 = vpop.f32.mrb[0].mxu0
    %v242 = vadd.f32 0.0, %v241
    %243 = vdwg.mxu0
    %v244 = vpack.c.bf16 %v228, %v228
    %v245 = vpack.c.bf16 %v231, %v231
    %v246 = vpack.c.bf16 %v236, %v236
    %v247 = vpack.c.bf16 %v240, %v240
    %249 = vrot.lane.b32.xlu0 %v246, 96
    %v250 = vpop.permute.xlu0 %249
    %v252 = vsel %vm186, %v244, 0
    %v255 = vsel %vm186, %v250, 0
    %257 = vmatprep.subr.bf16.mxu0 0
    %258 = vmatpush1.bf16.xpose.msra.mxu0 %v255
    %259 = vmatprep.subr.bf16.mxu0 0
    %260 = vmatpush1.bf16.xpose.msra.mxu0 0
    %261 = vmatprep.subr.bf16.mxu0 0
    %262 = vmatpush1.bf16.xpose.msra.mxu0 0
    %263 = vmatprep.subr.bf16.mxu0 0
    %264 = vmatpush1.bf16.xpose.msra.mxu0 0
    %265 = vmatprep.subr.bf16.mxu0 0
    %266 = vmatpush1.bf16.xpose.msra.mxu0 0
    %267 = vmatprep.subr.bf16.mxu0 0
    %268 = vmatpush1.bf16.xpose.msra.mxu0 0
    %269 = vmatprep.subr.bf16.mxu0 0
    %270 = vmatpush1.bf16.xpose.msra.mxu0 0
    %271 = vmatprep.subr.bf16.mxu0 0
    %272 = vmatpush1.bf16.xpose.msra.mxu0 0
    %273 = vmatprep.subr.bf16.mxu0 0
    %274 = vmatpush1.bf16.xpose.msra.mxu0 0
    %275 = vmatprep.subr.bf16.mxu0 0
    %276 = vmatpush1.bf16.xpose.msra.mxu0 0
    %277 = vmatprep.subr.bf16.mxu0 0
    %278 = vmatpush1.bf16.xpose.msra.mxu0 0
    %279 = vmatprep.subr.bf16.mxu0 0
    %280 = vmatpush1.bf16.xpose.msra.mxu0 0
    %281 = vmatprep.subr.bf16.mxu0 0
    %282 = vmatpush1.bf16.xpose.msra.mxu0 0
    %283 = vmatprep.subr.bf16.mxu0 0
    %284 = vmatpush1.bf16.xpose.msra.mxu0 0
    %285 = vmatprep.subr.bf16.mxu0 0
    %286 = vmatpush1.bf16.xpose.msra.mxu0 0
    %287 = vmatprep.subr.bf16.mxu0 0
    %288 = vmatpush1.bf16.xpose.msra.mxu0 0
    %289 = vmatprep.mubr.bf16.mxu0 0
    %290 = vmatmul.mubr.bf16.gmra.mrb[0].mxu0 %v252
    %v291 = vpop.f32.mrb[0].mxu0
    %v292 = vadd.f32 0.0, %v291
    %v293 = vpop.f32.mrb[0].mxu0
    %v294 = vpop.f32.mrb[0].mxu0
    %v295 = vpop.f32.mrb[0].mxu0
    %296 = vdwg.mxu0
    %298 = vrot.lane.b32.xlu0 %v247, 96
    %v299 = vpop.permute.xlu0 %298
    %v301 = vsel %vm186, %v245, 0
    %v304 = vsel %vm186, %v299, 0
    %306 = vmatprep.subr.bf16.mxu0 0
    %307 = vmatpush1.bf16.xpose.msra.mxu0 %v304
    %308 = vmatprep.subr.bf16.mxu0 0
    %309 = vmatpush1.bf16.xpose.msra.mxu0 0
    %310 = vmatprep.subr.bf16.mxu0 0
    %311 = vmatpush1.bf16.xpose.msra.mxu0 0
    %312 = vmatprep.subr.bf16.mxu0 0
    %313 = vmatpush1.bf16.xpose.msra.mxu0 0
    %314 = vmatprep.subr.bf16.mxu0 0
    %315 = vmatpush1.bf16.xpose.msra.mxu0 0
    %316 = vmatprep.subr.bf16.mxu0 0
    %317 = vmatpush1.bf16.xpose.msra.mxu0 0
    %318 = vmatprep.subr.bf16.mxu0 0
    %319 = vmatpush1.bf16.xpose.msra.mxu0 0
    %320 = vmatprep.subr.bf16.mxu0 0
    %321 = vmatpush1.bf16.xpose.msra.mxu0 0
    %322 = vmatprep.subr.bf16.mxu0 0
    %323 = vmatpush1.bf16.xpose.msra.mxu0 0
    %324 = vmatprep.subr.bf16.mxu0 0
    %325 = vmatpush1.bf16.xpose.msra.mxu0 0
    %326 = vmatprep.subr.bf16.mxu0 0
    %327 = vmatpush1.bf16.xpose.msra.mxu0 0
    %328 = vmatprep.subr.bf16.mxu0 0
    %329 = vmatpush1.bf16.xpose.msra.mxu0 0
    %330 = vmatprep.subr.bf16.mxu0 0
    %331 = vmatpush1.bf16.xpose.msra.mxu0 0
    %332 = vmatprep.subr.bf16.mxu0 0
    %333 = vmatpush1.bf16.xpose.msra.mxu0 0
    %334 = vmatprep.subr.bf16.mxu0 0
    %335 = vmatpush1.bf16.xpose.msra.mxu0 0
    %336 = vmatprep.subr.bf16.mxu0 0
    %337 = vmatpush1.bf16.xpose.msra.mxu0 0
    %338 = vmatprep.mubr.bf16.mxu0 0
    %339 = vmatmul.mubr.bf16.gmra.mrb[0].mxu0 %v301
    %v340 = vpop.f32.mrb[0].mxu0
    %v341 = vadd.f32 0.0, %v340
    %v342 = vpop.f32.mrb[0].mxu0
    %v343 = vpop.f32.mrb[0].mxu0
    %v344 = vpop.f32.mrb[0].mxu0
    %345 = vdwg.mxu0
    %vm346 = vcmask 64512
    %v347 = vsel %vm346, %v292, -inf
    %348 = vmax.xlane.f32.xlu0 %v347
    %v349 = vpop.xlane.xlu0 %348
    %v350 = vsel %vm346, %v341, -inf
    %351 = vmax.xlane.f32.xlu0 %v350
    %v352 = vpop.xlane.xlu0 %351
    %v353 = vsub.f32 %v292, %v349
    %v354 = vsub.f32 %v341, %v352
    %v355 = vmul.f32 %v353, 1.442695
    %v356 = vpow.pop %v355
    %v357 = vmul.f32 %v354, 1.442695
    %v358 = vpow.pop %v357
    %v359 = vsel %vm346, %v356, 0.0
    %360 = vadd.xlane.f32.xlu0 %v359
    %v361 = vpop.xlane.xlu0 %360
    %v362 = vsel %vm346, %v358, 0.0
    %363 = vadd.xlane.f32.xlu0 %v362
    %v364 = vpop.xlane.xlu0 %363
    %v365 = vrcp.pop %v361
    %v366 = vrcp.pop %v364
    %v367 = vmul.f32 %v356, %v365
    %v368 = vmul.f32 %v358, %v366
    %v369 = vpack.c.bf16 %v367, %v367
    %v370 = vpack.c.bf16 %v368, %v368
    %371 = vrot.lane.b32.xlu0 %v246, 64
    %v372 = vpop.permute.xlu0 %371
    %v374 = vsel %vm346, %v369, 0
    %vm376 = vcmask 1043456
    %v378 = vsel %vm376, %v372, 0
    %380 = vmatprep.subr.bf16.mxu0 0
    %381 = vmatpush1.bf16.msra.mxu0 %v378
    %382 = vmatprep.subr.bf16.mxu0 0
    %383 = vmatpush1.bf16.msra.mxu0 0
    %384 = vmatprep.subr.bf16.mxu0 0
    %385 = vmatpush1.bf16.msra.mxu0 0
    %386 = vmatprep.subr.bf16.mxu0 0
    %387 = vmatpush1.bf16.msra.mxu0 0
    %388 = vmatprep.subr.bf16.mxu0 0
    %389 = vmatpush1.bf16.msra.mxu0 0
    %390 = vmatprep.subr.bf16.mxu0 0
    %391 = vmatpush1.bf16.msra.mxu0 0
    %392 = vmatprep.subr.bf16.mxu0 0
    %393 = vmatpush1.bf16.msra.mxu0 0
    %394 = vmatprep.subr.bf16.mxu0 0
    %395 = vmatpush1.bf16.msra.mxu0 0
    %396 = vmatprep.subr.bf16.mxu0 0
    %397 = vmatpush1.bf16.msra.mxu0 0
    %398 = vmatprep.subr.bf16.mxu0 0
    %399 = vmatpush1.bf16.msra.mxu0 0
    %400 = vmatprep.subr.bf16.mxu0 0
    %401 = vmatpush1.bf16.msra.mxu0 0
    %402 = vmatprep.subr.bf16.mxu0 0
    %403 = vmatpush1.bf16.msra.mxu0 0
    %404 = vmatprep.subr.bf16.mxu0 0
    %405 = vmatpush1.bf16.msra.mxu0 0
    %406 = vmatprep.subr.bf16.mxu0 0
    %407 = vmatpush1.bf16.msra.mxu0 0
    %408 = vmatprep.subr.bf16.mxu0 0
    %409 = vmatpush1.bf16.msra.mxu0 0
    %410 = vmatprep.subr.bf16.mxu0 0
    %411 = vmatpush1.bf16.msra.mxu0 0
    %412 = vmatprep.mubr.bf16.mxu0 0
    %413 = vmatmul.mubr.bf16.gmra.mrb[0].mxu0 %v374
    %v414 = vpop.f32.mrb[0].mxu0
    %v415 = vadd.f32 0.0, %v414
    %v416 = vpop.f32.mrb[0].mxu0
    %v417 = vpop.f32.mrb[0].mxu0
    %v418 = vpop.f32.mrb[0].mxu0
    %419 = vdwg.mxu0
    %420 = vrot.lane.b32.xlu0 %v247, 64
    %v421 = vpop.permute.xlu0 %420
    %v423 = vsel %vm346, %v370, 0
    %v426 = vsel %vm376, %v421, 0
    %428 = vmatprep.subr.bf16.mxu0 0
    %429 = vmatpush1.bf16.msra.mxu0 %v426
    %430 = vmatprep.subr.bf16.mxu0 0
    %431 = vmatpush1.bf16.msra.mxu0 0
    %432 = vmatprep.subr.bf16.mxu0 0
    %433 = vmatpush1.bf16.msra.mxu0 0
    %434 = vmatprep.subr.bf16.mxu0 0
    %435 = vmatpush1.bf16.msra.mxu0 0
    %436 = vmatprep.subr.bf16.mxu0 0
    %437 = vmatpush1.bf16.msra.mxu0 0
    %438 = vmatprep.subr.bf16.mxu0 0
    %439 = vmatpush1.bf16.msra.mxu0 0
    %440 = vmatprep.subr.bf16.mxu0 0
    %441 = vmatpush1.bf16.msra.mxu0 0
    %442 = vmatprep.subr.bf16.mxu0 0
    %443 = vmatpush1.bf16.msra.mxu0 0
    %444 = vmatprep.subr.bf16.mxu0 0
    %445 = vmatpush1.bf16.msra.mxu0 0
    %446 = vmatprep.subr.bf16.mxu0 0
    %447 = vmatpush1.bf16.msra.mxu0 0
    %448 = vmatprep.subr.bf16.mxu0 0
    %449 = vmatpush1.bf16.msra.mxu0 0
    %450 = vmatprep.subr.bf16.mxu0 0
    %451 = vmatpush1.bf16.msra.mxu0 0
    %452 = vmatprep.subr.bf16.mxu0 0
    %453 = vmatpush1.bf16.msra.mxu0 0
    %454 = vmatprep.subr.bf16.mxu0 0
    %455 = vmatpush1.bf16.msra.mxu0 0
    %456 = vmatprep.subr.bf16.mxu0 0
    %457 = vmatpush1.bf16.msra.mxu0 0
    %458 = vmatprep.subr.bf16.mxu0 0
    %459 = vmatpush1.bf16.msra.mxu0 0
    %460 = vmatprep.mubr.bf16.mxu0 0
    %461 = vmatmul.mubr.bf16.gmra.mrb[0].mxu0 %v423
    %v462 = vpop.f32.mrb[0].mxu0
    %v463 = vadd.f32 0.0, %v462
    %v464 = vpop.f32.mrb[0].mxu0
    %v465 = vpop.f32.mrb[0].mxu0
    %v466 = vpop.f32.mrb[0].mxu0
    %467 = vdwg.mxu0
    %v468 = vpack.c.bf16 %v463, %v415
    %469 = vrot.lane.b32.xlu0 %v179, 96
    %v470 = vpop.permute.xlu0 %469
    %471 = vrot.lane.b32.xlu0 %v181, 96
    %v472 = vpop.permute.xlu0 %471
    %v476 = vsel %vm186, %v468, 0
    %478 = vmatprep.subr.bf16.mxu0 0
    %479 = vmatpush1.bf16.msra.mxu0 %v470
    %480 = vmatprep.subr.bf16.mxu0 0
    %481 = vmatpush1.bf16.msra.mxu0 %v472
    %482 = vmatprep.subr.bf16.mxu0 0
    %483 = vmatpush1.bf16.msra.mxu0 0
    %484 = vmatprep.subr.bf16.mxu0 0
    %485 = vmatpush1.bf16.msra.mxu0 0
    %486 = vmatprep.subr.bf16.mxu0 0
    %487 = vmatpush1.bf16.msra.mxu0 0
    %488 = vmatprep.subr.bf16.mxu0 0
    %489 = vmatpush1.bf16.msra.mxu0 0
    %490 = vmatprep.subr.bf16.mxu0 0
    %491 = vmatpush1.bf16.msra.mxu0 0
    %492 = vmatprep.subr.bf16.mxu0 0
    %493 = vmatpush1.bf16.msra.mxu0 0
    %494 = vmatprep.subr.bf16.mxu0 0
    %495 = vmatpush1.bf16.msra.mxu0 0
    %496 = vmatprep.subr.bf16.mxu0 0
    %497 = vmatpush1.bf16.msra.mxu0 0
    %498 = vmatprep.subr.bf16.mxu0 0
    %499 = vmatpush1.bf16.msra.mxu0 0
    %500 = vmatprep.subr.bf16.mxu0 0
    %501 = vmatpush1.bf16.msra.mxu0 0
    %502 = vmatprep.subr.bf16.mxu0 0
    %503 = vmatpush1.bf16.msra.mxu0 0
    %504 = vmatprep.subr.bf16.mxu0 0
    %505 = vmatpush1.bf16.msra.mxu0 0
    %506 = vmatprep.subr.bf16.mxu0 0
    %507 = vmatpush1.bf16.msra.mxu0 0
    %508 = vmatprep.subr.bf16.mxu0 0
    %509 = vmatpush1.bf16.msra.mxu0 0
    %510 = vmatprep.mubr.bf16.mxu0 0
    %511 = vmatmul.mubr.bf16.gmra.mrb[0].mxu0 %v476
    %v512 = vpop.f32.mrb[0].mxu0
    %v513 = vadd.f32 0.0, %v512
    %v514 = vpop.f32.mrb[0].mxu0
    %v515 = vpop.f32.mrb[0].mxu0
    %v516 = vadd.f32 0.0, %v515
    %v517 = vpop.f32.mrb[0].mxu0
    %518 = vdwg.mxu0
    %v519 = vpack.c.bf16 %v513, %v513
    %v520 = vpack.c.bf16 %v516, %v516
    %v521 = vpack.c.bf16 %v238, %v238
    %v522 = vpack.c.bf16 %v242, %v242
    %523 = vrot.lane.b32.xlu0 %v246, 32
    %v524 = vpop.permute.xlu0 %523
    %v526 = vsel %vm186, %v519, 0
    %v529 = vsel %vm186, %v524, 0
    %531 = vmatprep.subr.bf16.mxu0 0
    %532 = vmatpush1.bf16.xpose.msra.mxu0 %v529
    %533 = vmatprep.subr.bf16.mxu0 0
    %534 = vmatpush1.bf16.xpose.msra.mxu0 0
    %535 = vmatprep.subr.bf16.mxu0 0
    %536 = vmatpush1.bf16.xpose.msra.mxu0 0
    %537 = vmatprep.subr.bf16.mxu0 0
    %538 = vmatpush1.bf16.xpose.msra.mxu0 0
    %539 = vmatprep.subr.bf16.mxu0 0
    %540 = vmatpush1.bf16.xpose.msra.mxu0 0
    %541 = vmatprep.subr.bf16.mxu0 0
    %542 = vmatpush1.bf16.xpose.msra.mxu0 0
    %543 = vmatprep.subr.bf16.mxu0 0
    %544 = vmatpush1.bf16.xpose.msra.mxu0 0
    %545 = vmatprep.subr.bf16.mxu0 0
    %546 = vmatpush1.bf16.xpose.msra.mxu0 0
    %547 = vmatprep.subr.bf16.mxu0 0
    %548 = vmatpush1.bf16.xpose.msra.mxu0 0
    %549 = vmatprep.subr.bf16.mxu0 0
    %550 = vmatpush1.bf16.xpose.msra.mxu0 0
    %551 = vmatprep.subr.bf16.mxu0 0
    %552 = vmatpush1.bf16.xpose.msra.mxu0 0
    %553 = vmatprep.subr.bf16.mxu0 0
    %554 = vmatpush1.bf16.xpose.msra.mxu0 0
    %555 = vmatprep.subr.bf16.mxu0 0
    %556 = vmatpush1.bf16.xpose.msra.mxu0 0
    %557 = vmatprep.subr.bf16.mxu0 0
    %558 = vmatpush1.bf16.xpose.msra.mxu0 0
    %559 = vmatprep.subr.bf16.mxu0 0
    %560 = vmatpush1.bf16.xpose.msra.mxu0 0
    %561 = vmatprep.subr.bf16.mxu0 0
    %562 = vmatpush1.bf16.xpose.msra.mxu0 0
    %563 = vmatprep.mubr.bf16.mxu0 0
    %564 = vmatmul.mubr.bf16.gmra.mrb[0].mxu0 %v526
    %v565 = vpop.f32.mrb[0].mxu0
    %v566 = vadd.f32 0.0, %v565
    %v567 = vpop.f32.mrb[0].mxu0
    %v568 = vpop.f32.mrb[0].mxu0
    %v569 = vpop.f32.mrb[0].mxu0
    %570 = vdwg.mxu0
    %571 = vrot.lane.b32.xlu0 %v247, 32
    %v572 = vpop.permute.xlu0 %571
    %v574 = vsel %vm186, %v520, 0
    %v577 = vsel %vm186, %v572, 0
    %579 = vmatprep.subr.bf16.mxu0 0
    %580 = vmatpush1.bf16.xpose.msra.mxu0 %v577
    %581 = vmatprep.subr.bf16.mxu0 0
    %582 = vmatpush1.bf16.xpose.msra.mxu0 0
    %583 = vmatprep.subr.bf16.mxu0 0
    %584 = vmatpush1.bf16.xpose.msra.mxu0 0
    %585 = vmatprep.subr.bf16.mxu0 0
    %586 = vmatpush1.bf16.xpose.msra.mxu0 0
    %587 = vmatprep.subr.bf16.mxu0 0
    %588 = vmatpush1.bf16.xpose.msra.mxu0 0
    %589 = vmatprep.subr.bf16.mxu0 0
    %590 = vmatpush1.bf16.xpose.msra.mxu0 0
    %591 = vmatprep.subr.bf16.mxu0 0
    %592 = vmatpush1.bf16.xpose.msra.mxu0 0
    %593 = vmatprep.subr.bf16.mxu0 0
    %594 = vmatpush1.bf16.xpose.msra.mxu0 0
    %595 = vmatprep.subr.bf16.mxu0 0
    %596 = vmatpush1.bf16.xpose.msra.mxu0 0
    %597 = vmatprep.subr.bf16.mxu0 0
    %598 = vmatpush1.bf16.xpose.msra.mxu0 0
    %599 = vmatprep.subr.bf16.mxu0 0
    %600 = vmatpush1.bf16.xpose.msra.mxu0 0
    %601 = vmatprep.subr.bf16.mxu0 0
    %602 = vmatpush1.bf16.xpose.msra.mxu0 0
    %603 = vmatprep.subr.bf16.mxu0 0
    %604 = vmatpush1.bf16.xpose.msra.mxu0 0
    %605 = vmatprep.subr.bf16.mxu0 0
    %606 = vmatpush1.bf16.xpose.msra.mxu0 0
    %607 = vmatprep.subr.bf16.mxu0 0
    %608 = vmatpush1.bf16.xpose.msra.mxu0 0
    %609 = vmatprep.subr.bf16.mxu0 0
    %610 = vmatpush1.bf16.xpose.msra.mxu0 0
    %611 = vmatprep.mubr.bf16.mxu0 0
    %612 = vmatmul.mubr.bf16.gmra.mrb[0].mxu0 %v574
    %v613 = vpop.f32.mrb[0].mxu0
    %v614 = vadd.f32 0.0, %v613
    %v615 = vpop.f32.mrb[0].mxu0
    %v616 = vpop.f32.mrb[0].mxu0
    %v617 = vpop.f32.mrb[0].mxu0
    %618 = vdwg.mxu0
    %v619 = vsel %vm346, %v566, -inf
    %620 = vmax.xlane.f32.xlu0 %v619
    %v621 = vpop.xlane.xlu0 %620
    %v622 = vsel %vm346, %v614, -inf
    %623 = vmax.xlane.f32.xlu0 %v622
    %v624 = vpop.xlane.xlu0 %623
    %v625 = vsub.f32 %v566, %v621
    %v626 = vsub.f32 %v614, %v624
    %v627 = vmul.f32 %v625, 1.442695
    %v628 = vpow.pop %v627
    %v629 = vmul.f32 %v626, 1.442695
    %v630 = vpow.pop %v629
    %v631 = vsel %vm346, %v628, 0.0
    %632 = vadd.xlane.f32.xlu0 %v631
    %v633 = vpop.xlane.xlu0 %632
    %v634 = vsel %vm346, %v630, 0.0
    %635 = vadd.xlane.f32.xlu0 %v634
    %v636 = vpop.xlane.xlu0 %635
    %v637 = vrcp.pop %v633
    %v638 = vrcp.pop %v636
    %v639 = vmul.f32 %v628, %v637
    %v640 = vmul.f32 %v630, %v638
    %v641 = vpack.c.bf16 %v639, %v639
    %v642 = vpack.c.bf16 %v640, %v640
    %v644 = vsel %vm346, %v641, 0
    %v647 = vsel %vm376, %v521, 0
    %649 = vmatprep.subr.bf16.mxu0 0
    %650 = vmatpush1.bf16.msra.mxu0 %v647
    %651 = vmatprep.subr.bf16.mxu0 0
    %652 = vmatpush1.bf16.msra.mxu0 0
    %653 = vmatprep.subr.bf16.mxu0 0
    %654 = vmatpush1.bf16.msra.mxu0 0
    %655 = vmatprep.subr.bf16.mxu0 0
    %656 = vmatpush1.bf16.msra.mxu0 0
    %657 = vmatprep.subr.bf16.mxu0 0
    %658 = vmatpush1.bf16.msra.mxu0 0
    %659 = vmatprep.subr.bf16.mxu0 0
    %660 = vmatpush1.bf16.msra.mxu0 0
    %661 = vmatprep.subr.bf16.mxu0 0
    %662 = vmatpush1.bf16.msra.mxu0 0
    %663 = vmatprep.subr.bf16.mxu0 0
    %664 = vmatpush1.bf16.msra.mxu0 0
    %665 = vmatprep.subr.bf16.mxu0 0
    %666 = vmatpush1.bf16.msra.mxu0 0
    %667 = vmatprep.subr.bf16.mxu0 0
    %668 = vmatpush1.bf16.msra.mxu0 0
    %669 = vmatprep.subr.bf16.mxu0 0
    %670 = vmatpush1.bf16.msra.mxu0 0
    %671 = vmatprep.subr.bf16.mxu0 0
    %672 = vmatpush1.bf16.msra.mxu0 0
    %673 = vmatprep.subr.bf16.mxu0 0
    %674 = vmatpush1.bf16.msra.mxu0 0
    %675 = vmatprep.subr.bf16.mxu0 0
    %676 = vmatpush1.bf16.msra.mxu0 0
    %677 = vmatprep.subr.bf16.mxu0 0
    %678 = vmatpush1.bf16.msra.mxu0 0
    %679 = vmatprep.subr.bf16.mxu0 0
    %680 = vmatpush1.bf16.msra.mxu0 0
    %681 = vmatprep.mubr.bf16.mxu0 0
    %682 = vmatmul.mubr.bf16.gmra.mrb[0].mxu0 %v644
    %v683 = vpop.f32.mrb[0].mxu0
    %v684 = vadd.f32 0.0, %v683
    %v685 = vpop.f32.mrb[0].mxu0
    %v686 = vpop.f32.mrb[0].mxu0
    %v687 = vpop.f32.mrb[0].mxu0
    %688 = vdwg.mxu0
    %v690 = vsel %vm346, %v642, 0
    %v693 = vsel %vm376, %v522, 0
    %695 = vmatprep.subr.bf16.mxu0 0
    %696 = vmatpush1.bf16.msra.mxu0 %v693
    %697 = vmatprep.subr.bf16.mxu0 0
    %698 = vmatpush1.bf16.msra.mxu0 0
    %699 = vmatprep.subr.bf16.mxu0 0
    %700 = vmatpush1.bf16.msra.mxu0 0
    %701 = vmatprep.subr.bf16.mxu0 0
    %702 = vmatpush1.bf16.msra.mxu0 0
    %703 = vmatprep.subr.bf16.mxu0 0
    %704 = vmatpush1.bf16.msra.mxu0 0
    %705 = vmatprep.subr.bf16.mxu0 0
    %706 = vmatpush1.bf16.msra.mxu0 0
    %707 = vmatprep.subr.bf16.mxu0 0
    %708 = vmatpush1.bf16.msra.mxu0 0
    %709 = vmatprep.subr.bf16.mxu0 0
    %710 = vmatpush1.bf16.msra.mxu0 0
    %711 = vmatprep.subr.bf16.mxu0 0
    %712 = vmatpush1.bf16.msra.mxu0 0
    %713 = vmatprep.subr.bf16.mxu0 0
    %714 = vmatpush1.bf16.msra.mxu0 0
    %715 = vmatprep.subr.bf16.mxu0 0
    %716 = vmatpush1.bf16.msra.mxu0 0
    %717 = vmatprep.subr.bf16.mxu0 0
    %718 = vmatpush1.bf16.msra.mxu0 0
    %719 = vmatprep.subr.bf16.mxu0 0
    %720 = vmatpush1.bf16.msra.mxu0 0
    %721 = vmatprep.subr.bf16.mxu0 0
    %722 = vmatpush1.bf16.msra.mxu0 0
    %723 = vmatprep.subr.bf16.mxu0 0
    %724 = vmatpush1.bf16.msra.mxu0 0
    %725 = vmatprep.subr.bf16.mxu0 0
    %726 = vmatpush1.bf16.msra.mxu0 0
    %727 = vmatprep.mubr.bf16.mxu0 0
    %728 = vmatmul.mubr.bf16.gmra.mrb[0].mxu0 %v690
    %v729 = vpop.f32.mrb[0].mxu0
    %v730 = vadd.f32 0.0, %v729
    %v731 = vpop.f32.mrb[0].mxu0
    %v732 = vpop.f32.mrb[0].mxu0
    %v733 = vpop.f32.mrb[0].mxu0
    %734 = vdwg.mxu0
    %v735 = vpack.c.bf16 %v730, %v684
    %736 = vrot.lane.b32.xlu0 %v179, 64
    %v737 = vpop.permute.xlu0 %736
    %738 = vrot.lane.b32.xlu0 %v181, 64
    %v739 = vpop.permute.xlu0 %738
    %v743 = vsel %vm186, %v735, 0
    %745 = vmatprep.subr.bf16.mxu0 0
    %746 = vmatpush1.bf16.msra.mxu0 %v737
    %747 = vmatprep.subr.bf16.mxu0 0
    %748 = vmatpush1.bf16.msra.mxu0 %v739
    %749 = vmatprep.subr.bf16.mxu0 0
    %750 = vmatpush1.bf16.msra.mxu0 0
    %751 = vmatprep.subr.bf16.mxu0 0
    %752 = vmatpush1.bf16.msra.mxu0 0
    %753 = vmatprep.subr.bf16.mxu0 0
    %754 = vmatpush1.bf16.msra.mxu0 0
    %755 = vmatprep.subr.bf16.mxu0 0
    %756 = vmatpush1.bf16.msra.mxu0 0
    %757 = vmatprep.subr.bf16.mxu0 0
    %758 = vmatpush1.bf16.msra.mxu0 0
    %759 = vmatprep.subr.bf16.mxu0 0
    %760 = vmatpush1.bf16.msra.mxu0 0
    %761 = vmatprep.subr.bf16.mxu0 0
    %762 = vmatpush1.bf16.msra.mxu0 0
    %763 = vmatprep.subr.bf16.mxu0 0
    %764 = vmatpush1.bf16.msra.mxu0 0
    %765 = vmatprep.subr.bf16.mxu0 0
    %766 = vmatpush1.bf16.msra.mxu0 0
    %767 = vmatprep.subr.bf16.mxu0 0
    %768 = vmatpush1.bf16.msra.mxu0 0
    %769 = vmatprep.subr.bf16.mxu0 0
    %770 = vmatpush1.bf16.msra.mxu0 0
    %771 = vmatprep.subr.bf16.mxu0 0
    %772 = vmatpush1.bf16.msra.mxu0 0
    %773 = vmatprep.subr.bf16.mxu0 0
    %774 = vmatpush1.bf16.msra.mxu0 0
    %775 = vmatprep.subr.bf16.mxu0 0
    %776 = vmatpush1.bf16.msra.mxu0 0
    %777 = vmatprep.mubr.bf16.mxu0 0
    %778 = vmatmul.mubr.bf16.gmra.mrb[0].mxu0 %v743
    %v779 = vpop.f32.mrb[0].mxu0
    %v780 = vadd.f32 0.0, %v779
    %v781 = vpop.f32.mrb[0].mxu0
    %v782 = vpop.f32.mrb[0].mxu0
    %v783 = vadd.f32 0.0, %v782
    %v784 = vpop.f32.mrb[0].mxu0
    %785 = vdwg.mxu0
    %786 = vst.msk [vmem:[#allocation2] sm:$0xff] %vm186, %v780
    %787 = vst.msk [vmem:[#allocation2 + $0x10] sm:$0xff] %vm186, %v783
    %788 = vst.msk [vmem:[#allocation2 + $0x8] sm:$0xff] %vm186, %v40
    %789 = vst.msk [vmem:[#allocation2 + $0x18] sm:$0xff] %vm186, %v72
    // Predicated region
    $region14: #{tpu_custom_call.1} parent=1 // pred_check
      _
    $region15: #{tpu_custom_call.1} parent=1 // pred_check_branch
      %791 = sbr.rel (0) target = $region17
    $region16: #{tpu_custom_call.1} parent=1 // pred_region
      %s793 = ssub.s32 512, 512
      %794 = vsyncadd [#allocation3], %s793
      %s795 = sshll.u32 [#allocation2], 4
      %s796 = int_to_ptr.vmem [resolvable:$true] %s795
      %801 = dma.vmem_to_hbm [thread:$0]  %s796, 512, %s3, [#allocation3], 128, 128, 8
    $region17: #{tpu_custom_call.1} parent=1 // pred_fallthru
      _
    // Predicated region
    $region18: #{tpu_custom_call.1} parent=1 // pred_check
      _
    $region19: #{tpu_custom_call.1} parent=1 // pred_check_branch
      %803 = sbr.rel (0) target = $region21
    $region20: #{tpu_custom_call.1} parent=1 // pred_region
      %804 = dma.done [#allocation3], 512
    $region21: #{tpu_custom_call.1} parent=1 // pred_fallthru
      _
    %805 = vsyncpa [#allocation3], 1

</llo_original>
